<compile_context>
chip_gen: v5e
topology: v5e:2x2
jax: 0.10.0
libtpu: 0.0.40
codegen_flags: <defaults>
</compile_context>

<pallas_src>
import functools

import jax
import jax.numpy as jnp
from jax.experimental import pallas as pl
from jax.experimental.pallas import tpu as pltpu


_LANES = 128
_SUBLANES = 8
_LOG_GUARD = 1e-8


def _round_up(x, m):
    return ((x + m - 1) // m) * m


def _packed_kernel(eps_ref, x_ref, sel_ref, o_ref, *, gamma):
    # eps_ref: SMEM (1,) f32            -- learnable epsilon
    # x_ref:   VMEM (tm_p, 128), native dtype; each 128-lane row holds
    #          `pack = 128 // D` original rows of length D, back to back.
    # sel_ref: VMEM (128, pack) f32 constant; sel[l, j] = 1 iff l // D == j
    # o_ref:   VMEM (tm_p, pack) f32    -- one norm-result per original row
    x = x_ref[...].astype(jnp.float32)
    sq = x * x
    # Per-original-row sums of squares via a single MXU matmul (segment sum
    # along the lane axis); the MXU is otherwise idle in this kernel.
    sq_sum = jnp.dot(sq, sel_ref[...], preferred_element_type=jnp.float32)
    dist = jnp.sqrt(sq_sum)
    eps = eps_ref[0]
    o_ref[...] = (gamma * jnp.log(eps * dist + _LOG_GUARD)).astype(o_ref.dtype)


def _rowwise_kernel(eps_ref, x_ref, o_ref, *, gamma):
    # Fallback path for emb_dims that don't divide 128 (or row counts that
    # don't split into full 128-lane rows).
    # x_ref: VMEM (tm, D) native dtype; o_ref: VMEM (tm, 1) f32
    x = x_ref[...].astype(jnp.float32)
    sq_sum = jnp.sum(x * x, axis=-1, keepdims=True)
    dist = jnp.sqrt(sq_sum)
    eps = eps_ref[0]
    o_ref[...] = (gamma * jnp.log(eps * dist + _LOG_GUARD)).astype(o_ref.dtype)


def one_anchor_forward(x, c=None, *, epsilon, gamma=1.0, scale=True):
    """Pallas implementation of oneAnchorModel.forward.

    x:       (..., emb_dim) array (any float dtype; streamed in native dtype)
    c:       unused (matches the PyTorch signature)
    epsilon: scalar parameter (shape (1,) or scalar)
    returns: (..., 1) float32
    """
    del c  # not used by the reference forward

    orig_shape = x.shape
    D = orig_shape[-1]
    rows = 1
    for s in orig_shape[:-1]:
        rows *= s
    x2 = x.reshape(rows, D)  # native dtype; contiguous reshape (no HBM copy)

    eps = jnp.asarray(epsilon, dtype=jnp.float32).reshape(1)
    if scale:
        # PyTorch forward replaces a negative learnable epsilon with 0.2
        # before computing the logits.  We apply the same value functionally.
        # TODO(synk): the in-place nn.Parameter reassignment (training-time
        # side effect) has no functional-JAX equivalent and is not replicated.
        eps = jnp.where(eps < 0, jnp.full_like(eps, 0.2), eps)

    itemsize = jnp.dtype(x.dtype).itemsize
    compiler_params = pltpu.CompilerParams(
        dimension_semantics=("parallel",),       # lets v7x shard steps on 2 TCs
        vmem_limit_bytes=32 * 1024 * 1024,       # tiles kept well under this
    )
    gamma = float(gamma)

    use_packed = (
        D <= _LANES and _LANES % D == 0 and rows % (_LANES // D) == 0
    )

    if use_packed:
        pack = _LANES // D
        rp = rows // pack                        # packed (lane-dense) rows
        x_packed = x2.reshape(rp, _LANES)        # row-major, free reshape

        # Double-buffered input tile at tm_p=1024 is 2 * 1024 * 128 * itemsize
        # (<= 1 MiB for f32) -> safe on v5e/v6e (128 MiB) and v7x (64 MiB).
        tm_p = min(1024, _round_up(rp, _SUBLANES))
        grid = (pl.cdiv(rp, tm_p),)

        # Segment-selection matrix: column j picks the D lanes of segment j.
        sel = (
            jnp.arange(_LANES)[:, None] // D == jnp.arange(pack)[None, :]
        ).astype(jnp.float32)

        kernel = functools.partial(_packed_kernel, gamma=gamma)
        out = pl.pallas_call(
            kernel,
            out_shape=jax.ShapeDtypeStruct((rp, pack), jnp.float32),
            grid=grid,
            in_specs=[
                pl.BlockSpec(memory_space=pltpu.SMEM),            # epsilon
                pl.BlockSpec((tm_p, _LANES), lambda i: (i, 0)),   # packed x
                pl.BlockSpec((_LANES, pack), lambda i: (0, 0)),   # selection
            ],
            out_specs=pl.BlockSpec((tm_p, pack), lambda i: (i, 0)),
            compiler_params=compiler_params,
        )(eps, x_packed, sel)
        out_flat = out.reshape(rows)             # row-major order == input order
    else:
        # Generic path: (tm, D) row tiles, reduce along the lane axis.
        lane_padded = _round_up(D, _LANES)
        budget = 8 * 1024 * 1024                 # double-buffered input budget
        tm_cap = max(
            _SUBLANES,
            (budget // (2 * lane_padded * itemsize)) // _SUBLANES * _SUBLANES,
        )
        tm = min(2048, tm_cap, _round_up(rows, _SUBLANES))
        grid = (pl.cdiv(rows, tm),)

        kernel = functools.partial(_rowwise_kernel, gamma=gamma)
        out = pl.pallas_call(
            kernel,
            out_shape=jax.ShapeDtypeStruct((rows, 1), jnp.float32),
            grid=grid,
            in_specs=[
                pl.BlockSpec(memory_space=pltpu.SMEM),            # epsilon
                pl.BlockSpec((tm, D), lambda i: (i, 0)),          # x row tile
            ],
            out_specs=pl.BlockSpec((tm, 1), lambda i: (i, 0)),
            compiler_params=compiler_params,
        )(eps, x2)
        out_flat = out.reshape(rows)

    return out_flat.reshape(orig_shape[:-1] + (1,))


if __name__ == "__main__":
    key = jax.random.PRNGKey(0)
    k1, k2, k3 = jax.random.split(key, 3)

    gamma = 1.0
    # Parameter init per __init__ (scale=True): epsilon = 1 * ones(1)
    epsilon_param = jnp.ones((1,), dtype=jnp.float32)

    def reference(xv, eps, g):
        dist = jnp.linalg.norm(xv.astype(jnp.float32), ord=2, axis=-1)
        return (g * jnp.log(eps[0] * dist + 1e-8))[..., None]

    # 1) Packed path: emb_dim=32 divides 128 and row count divides the pack.
    B, S, D = 2, 8, 32
    x1 = jax.random.normal(k1, (B, S, D), dtype=jnp.float32)
    c1 = jax.random.normal(k2, (B, S), dtype=jnp.float32)   # unused, fidelity
    out1 = jax.block_until_ready(
        one_anchor_forward(x1, c1, epsilon=epsilon_param, gamma=gamma)
    )
    assert out1.shape == (B, S, 1), out1.shape
    assert jnp.allclose(out1, reference(x1, epsilon_param, gamma),
                        atol=1e-5, rtol=1e-5), "packed path mismatch"

    # 2) Generic path: row count (3*7=21) not divisible by the packing factor.
    x2 = jax.random.normal(k2, (3, 7, 32), dtype=jnp.float32)
    out2 = jax.block_until_ready(
        one_anchor_forward(x2, None, epsilon=epsilon_param, gamma=gamma)
    )
    assert out2.shape == (3, 7, 1), out2.shape
    assert jnp.allclose(out2, reference(x2, epsilon_param, gamma),
                        atol=1e-5, rtol=1e-5), "generic path mismatch"

    # 3) Packed path with native bf16 streaming (upcast inside the kernel).
    x3 = jax.random.normal(k3, (4, 16, 32), dtype=jnp.bfloat16)
    out3 = jax.block_until_ready(
        one_anchor_forward(x3, None, epsilon=epsilon_param, gamma=gamma)
    )
    assert out3.shape == (4, 16, 1), out3.shape
    assert jnp.allclose(out3, reference(x3, epsilon_param, gamma),
                        atol=1e-3, rtol=1e-3), "bf16 path mismatch"

    print("KERNEL_OK")
</pallas_src>

<mosaic_0001>
module attributes {stable_mosaic.version = 11 : i64} {
  func.func @_packed_kernel(%arg0: i32, %arg1: memref<1xf32, #tpu.memory_space<smem>>, %arg2: memref<8x128xf32, #tpu.memory_space<vmem>>, %arg3: memref<128x4xf32, #tpu.memory_space<vmem>>, %arg4: memref<8x4xf32, #tpu.memory_space<vmem>>) attributes {dimension_semantics = [#tpu.dimension_semantics<parallel>], iteration_bounds = array<i64: 1>, scalar_prefetch = 0 : i64, scratch_operands = 0 : i64, tpu.core_type = #tpu.core_type<tc>, window_params = [{transform_indices = @transform_0, window_bounds = array<i64: 1>}, {transform_indices = @transform_1, window_bounds = array<i64: 8, 128>}, {pipeline_mode = #tpu.pipeline_mode<synchronous>, transform_indices = @transform_2, window_bounds = array<i64: 128, 4>}, {transform_indices = @transform_3, window_bounds = array<i64: 8, 4>}]} {
    %c0 = arith.constant 0 : index
    %c0_0 = arith.constant 0 : index
    %0 = vector.load %arg2[%c0, %c0_0] : memref<8x128xf32, #tpu.memory_space<vmem>>, vector<8x128xf32>
    %1 = arith.mulf %0, %0 : vector<8x128xf32>
    %c0_1 = arith.constant 0 : index
    %c0_2 = arith.constant 0 : index
    %2 = vector.load %arg3[%c0_1, %c0_2] : memref<128x4xf32, #tpu.memory_space<vmem>>, vector<128x4xf32>
    %cst = arith.constant dense<0.000000e+00> : vector<8x4xf32>
    %3 = tpu.matmul %1, %2, %cst {dimension_numbers = #tpu.dot_dimension_numbers<[1], [0], [0], [1], [0, 0, 1, 1], [], []>} : vector<8x128xf32>, vector<128x4xf32>, vector<8x4xf32> -> vector<8x4xf32>
    %4 = math.sqrt %3 : vector<8x4xf32>
    %c0_3 = arith.constant 0 : index
    %5 = memref.load %arg1[%c0_3] : memref<1xf32, #tpu.memory_space<smem>>
    %6 = vector.broadcast %5 : f32 to vector<8x4xf32>
    %7 = arith.mulf %6, %4 : vector<8x4xf32>
    %cst_4 = arith.constant 9.99999993E-9 : f32
    %8 = vector.broadcast %cst_4 : f32 to vector<8x4xf32>
    %9 = arith.addf %7, %8 : vector<8x4xf32>
    %10 = math.log %9 : vector<8x4xf32>
    %cst_5 = arith.constant 1.000000e+00 : f32
    %11 = vector.broadcast %cst_5 : f32 to vector<8x4xf32>
    %12 = arith.mulf %11, %10 : vector<8x4xf32>
    %c0_6 = arith.constant 0 : index
    %c0_7 = arith.constant 0 : index
    %13 = vector.load %arg4[%c0_6, %c0_7] : memref<8x4xf32, #tpu.memory_space<vmem>>, vector<8x4xf32>
    tpu.vector_store %arg4[%c0_6, %c0_7], %12 {strides = array<i32>} : memref<8x4xf32, #tpu.memory_space<vmem>>, vector<8x4xf32>,
    return
  }
  func.func @transform_0(%arg0: i32) -> i32 {
    %c0_i32 = arith.constant 0 : i32
    %c0_i32_0 = arith.constant 0 : i32
    return %c0_i32 : i32
  }
  func.func @transform_1(%arg0: i32) -> (i32, i32) {
    %c0_i32 = arith.constant 0 : i32
    %c0_i32_0 = arith.constant 0 : i32
    return %arg0, %c0_i32 : i32, i32
  }
  func.func @transform_2(%arg0: i32) -> (i32, i32) {
    %c0_i32 = arith.constant 0 : i32
    %c0_i32_0 = arith.constant 0 : i32
    %c0_i32_1 = arith.constant 0 : i32
    return %c0_i32, %c0_i32_0 : i32, i32
  }
  func.func @transform_3(%arg0: i32) -> (i32, i32) {
    %c0_i32 = arith.constant 0 : i32
    %c0_i32_0 = arith.constant 0 : i32
    return %arg0, %c0_i32 : i32, i32
  }
}

</mosaic_0001>

<llo_original>
// kernel: tpu_custom_call.1
$region0: #{tpu_custom_call.1}
  #allocation0 [shape = 'u32[]', space=smem, size = 0x4, offset = 0x4, fixed_abs, tag = 'smem constant byte address 0x4 - core index']
  #allocation1 [shape = 'u32[72,128]{1,0:T(1,128)}', space=vmem, size = 0x9000, scoped, tag = 'internal scratch']
  #allocation2 [shape = 'f32[1]{0:T(128)S(6)}', space=smem, size = 0x200, scoped, tag = 'scoped memory for tpu_custom_call.1']
  %s0 = inlined_call_operand.<no memory space> [shape: f32[1], index: 0, kind: input, shape index: {}]
  %s1 = inlined_call_operand.vmem [shape: f32[4,128], index: 1, kind: input, shape index: {}]
  %s2 = inlined_call_operand.vmem [shape: f32[128,4], index: 2, kind: input, shape index: {}]
  %s3 = inlined_call_operand.hbm [shape: f32[4,4], index: 3, kind: output, shape index: {}]
  %s4 = sld [smem:[#allocation0]]
  $region22: #{tpu_custom_call.1} parent=0
    _
  %s6 = ssub.s32 1, %s4
  %s7 = scalar_select 0, %s6, %s4
  %8 = sst [smem:[#allocation2]] %s0
  $region1: #{tpu_custom_call.1} parent=0
    #allocation3 [shape = 'u8[4096]{0}', space=vmem, size = 0x1000, scoped, tag = 'output window, operand 0, single buffered']
    #allocation4 [shape = 's32[1]{0}', space=sflag, size = 0x4, scoped, tag = 'scoped memory for tpu_custom_call.1']
    %9 = vsyncpa [#allocation4], 0
    // Predicated region
    $region2: #{tpu_custom_call.1} parent=1 // pred_check
      _
    $region3: #{tpu_custom_call.1} parent=1 // pred_check_branch
      %11 = sbr.rel (0) target = $region5
    $region4: #{tpu_custom_call.1} parent=1 // pred_region
      _
    $region5: #{tpu_custom_call.1} parent=1 // pred_fallthru
      _
    // Predicated region
    $region6: #{tpu_custom_call.1} parent=1 // pred_check
      _
    $region7: #{tpu_custom_call.1} parent=1 // pred_check_branch
      %13 = sbr.rel (0) target = $region9
    $region8: #{tpu_custom_call.1} parent=1 // pred_region
      _
    $region9: #{tpu_custom_call.1} parent=1 // pred_fallthru
      _
    // Predicated region
    $region10: #{tpu_custom_call.1} parent=1 // pred_check
      _
    $region11: #{tpu_custom_call.1} parent=1 // pred_check_branch
      %15 = sbr.rel (0) target = $region13
    $region12: #{tpu_custom_call.1} parent=1 // pred_region
      _
    $region13: #{tpu_custom_call.1} parent=1 // pred_fallthru
      _
    %v16 = vld [vmem:[%s1] sm:$0xff]
    %v17 = vmul.f32 %v16, %v16
    %v18 = vld [vmem:[%s2] sm:$0xff]
    %v19 = vld [vmem:[%s2 + $0x8] sm:$0xff]
    %v20 = vld [vmem:[%s2 + $0x10] sm:$0xff]
    %v21 = vld [vmem:[%s2 + $0x18] sm:$0xff]
    %v22 = vld [vmem:[%s2 + $0x20] sm:$0xff]
    %v23 = vld [vmem:[%s2 + $0x28] sm:$0xff]
    %v24 = vld [vmem:[%s2 + $0x30] sm:$0xff]
    %v25 = vld [vmem:[%s2 + $0x38] sm:$0xff]
    %v26 = vld [vmem:[%s2 + $0x40] sm:$0xff]
    %v27 = vld [vmem:[%s2 + $0x48] sm:$0xff]
    %v28 = vld [vmem:[%s2 + $0x50] sm:$0xff]
    %v29 = vld [vmem:[%s2 + $0x58] sm:$0xff]
    %v30 = vld [vmem:[%s2 + $0x60] sm:$0xff]
    %v31 = vld [vmem:[%s2 + $0x68] sm:$0xff]
    %v32 = vld [vmem:[%s2 + $0x70] sm:$0xff]
    %v33 = vld [vmem:[%s2 + $0x78] sm:$0xff]
    %34 = vmatpush.msra.mxu0 %v33
    %35 = vmatpush.msra.mxu0 %v32
    %36 = vmatpush.msra.mxu0 %v31
    %37 = vmatpush.msra.mxu0 %v30
    %38 = vmatpush.msra.mxu0 %v29
    %39 = vmatpush.msra.mxu0 %v28
    %40 = vmatpush.msra.mxu0 %v27
    %41 = vmatpush.msra.mxu0 %v26
    %42 = vmatpush.msra.mxu0 %v25
    %43 = vmatpush.msra.mxu0 %v24
    %44 = vmatpush.msra.mxu0 %v23
    %45 = vmatpush.msra.mxu0 %v22
    %46 = vmatpush.msra.mxu0 %v21
    %47 = vmatpush.msra.mxu0 %v20
    %48 = vmatpush.msra.mxu0 %v19
    %49 = vmatpush.msra.mxu0 %v18
    %50 = vmatmul.f32.gmra.mxu0 %v17
    %v51 = vpop.f32.mrf.mxu0
    %v52 = vadd.f32 0.0, %v51
    %53 = vdwg.mxu0
    %v54 = vrsqrt.pop %v52
    %v55 = vmul.f32 %v54, %v52
    %v56 = vmul.f32 %v55, %v54
    %v57 = vmul.f32 0.5, %v56
    %v58 = vsub.f32 1.5, %v57
    %v59 = vmul.f32 %v54, %v58
    %v60 = vmul.f32 %v52, %v59
    %vm61 = vcmp.eq.f32.partialorder %v52, inf
    %v62 = vsel %vm61, %v52, %v60
    %vm63 = vcmp.eq.f32.partialorder %v52, 0.0
    %v64 = vand.u32 %v52, 2147483648
    %v65 = vsel %vm63, %v64, %v62
    %s66 = sld [smem:[#allocation2]]
    %v67 = vstv %s66
    %v68 = vmul.f32 %v67, %v65
    %v69 = vadd.f32 %v68, 1e-08
    %v70 = vlog2.pop %v69
    %v71 = vmul.f32 %v70, 0.6931472
    %vm72 = vcmask 31744
    %73 = vst.msk [vmem:[#allocation3] sm:$0xff] %vm72, %v71
    // Predicated region
    $region14: #{tpu_custom_call.1} parent=1 // pred_check
      _
    $region15: #{tpu_custom_call.1} parent=1 // pred_check_branch
      %75 = sbr.rel (0) target = $region17
    $region16: #{tpu_custom_call.1} parent=1 // pred_region
      %77 = vsyncadd [#allocation4], 64
      %s78 = sshll.u32 [#allocation3], 4
      %s79 = int_to_ptr.vmem [resolvable:$true] %s78
      %s80 = sshll.u32 %s3, 4
      %s81 = int_to_ptr.hbm [resolvable:$true] %s80
      %86 = dma.vmem_to_hbm [thread:$0]  %s79, 64, %s81, [#allocation4], 64, 64, 4
    $region17: #{tpu_custom_call.1} parent=1 // pred_fallthru
      _
    // Predicated region
    $region18: #{tpu_custom_call.1} parent=1 // pred_check
      _
    $region19: #{tpu_custom_call.1} parent=1 // pred_check_branch
      %88 = sbr.rel (0) target = $region21
    $region20: #{tpu_custom_call.1} parent=1 // pred_region
      %90 = dma.done [#allocation4], 128
    $region21: #{tpu_custom_call.1} parent=1 // pred_fallthru
      _
    %91 = vsyncpa [#allocation4], 1

</llo_original>
